<compile_context>
chip_gen: v7x
topology: tpu7x:2x2x1
jax: 0.10.0
libtpu: 0.0.40
codegen_flags: <defaults>
</compile_context>

<pallas_src>
import functools

import jax
import jax.numpy as jnp
from jax.experimental import pallas as pl
from jax.experimental.pallas import tpu as pltpu

_LANES = 128


def _round_up(x, m):
    return ((x + m - 1) // m) * m


def _rnn_seq_kernel(xs_ref, h0_ref, wx_ref, wh_ref, b_ref, slab_ref, h_scr,
                    *, hp, compute_dtype):
    """One grid step == one RNN timestep.

    xs_ref   : (B, I)        current-step input (time axis squeezed by BlockSpec)
    h0_ref   : (B, Hp)       initial hidden state, lane-padded (constant index_map)
    wx_ref   : (I, Hp+Op)    fused [W_i2h | W_i2o] rows for the input part (VMEM-resident)
    wh_ref   : (Hp, Hp+Op)   fused weight rows for the hidden part (VMEM-resident)
    b_ref    : (1, Hp+Op)    fused bias, f32 (padded logit columns = -inf)
    slab_ref : (B, Hp+Op)    per-step output slab: [:, :Hp] = hidden, [:, Hp:] = log-probs
    h_scr    : (B, Hp) f32   VMEM scratch carrying the hidden state across timesteps
    """
    t = pl.program_id(0)

    @pl.when(t == 0)
    def _():
        h_scr[...] = h0_ref[...].astype(jnp.float32)

    x = xs_ref[...].astype(compute_dtype)
    h = h_scr[...].astype(compute_dtype)

    # Fused i2h + i2o matmul, expressed as x-part + h-part so the (x, h) concat
    # is never materialized.  Accumulation is always f32.
    fused = (
        jnp.dot(x, wx_ref[...], preferred_element_type=jnp.float32)
        + jnp.dot(h, wh_ref[...], preferred_element_type=jnp.float32)
        + b_ref[...]
    )                                                        # (B, Hp+Op) f32

    # Both slices start on a 128-lane boundary -> no cross-lane data movement.
    h_new = fused[:, :hp]                                    # (B, Hp) hidden (no tanh, per module)
    logits = fused[:, hp:]                                   # (B, Op) real logits + (-inf) pad

    h_scr[...] = h_new                                       # carry to next step

    # Numerically stable log-softmax over dim=1.  Padded columns hold -inf bias,
    # so exp(pad)=0: they never affect max / sum, and no explicit mask is needed.
    m = jnp.max(logits, axis=1, keepdims=True)
    z = logits - m
    lse = jnp.log(jnp.sum(jnp.exp(z), axis=1, keepdims=True))
    logp = z - lse

    # Two lane-aligned, unmasked stores (offsets/widths are multiples of 128).
    slab_ref[:, :hp] = h_new.astype(slab_ref.dtype)
    slab_ref[:, hp:] = logp.astype(slab_ref.dtype)


def prepare_rnn_params(w_i2h, b_i2h, w_i2o, b_i2o, input_size,
                       *, compute_dtype=jnp.float32):
    """One-time weight preparation (split, fuse, pad to lane multiples, cast)."""
    H = int(w_i2h.shape[0])
    O = int(w_i2o.shape[0])
    I = int(input_size)
    Hp = _round_up(H, _LANES)
    Op = _round_up(O, _LANES)

    # nn.Linear weights are (out, in) with in = I + H.  Split the input axis into
    # the x-part and the h-part and pre-transpose to (in, out).
    w_i2h_x = w_i2h[:, :I].T         # (I, H)
    w_i2h_h = w_i2h[:, I:].T         # (H, H)
    w_i2o_x = w_i2o[:, :I].T         # (I, O)
    w_i2o_h = w_i2o[:, I:].T         # (H, O)

    def pad_cols(w, target):
        return jnp.pad(w, ((0, 0), (0, target - w.shape[1])))

    # Fused along the output axis: columns [0, Hp) -> hidden, [Hp, Hp+Op) -> logits.
    w_x = jnp.concatenate([pad_cols(w_i2h_x, Hp), pad_cols(w_i2o_x, Op)], axis=1)   # (I, Hp+Op)
    w_h = jnp.concatenate([pad_cols(w_i2h_h, Hp), pad_cols(w_i2o_h, Op)], axis=1)   # (H, Hp+Op)
    w_h = jnp.pad(w_h, ((0, Hp - H), (0, 0)))                                       # (Hp, Hp+Op)

    # Bias: zero pad for hidden columns, -inf pad for logit columns (exact log_softmax).
    b_h = jnp.pad(b_i2h.astype(jnp.float32), (0, Hp - H))
    b_o = jnp.pad(b_i2o.astype(jnp.float32), (0, Op - O), constant_values=-jnp.inf)
    b = jnp.concatenate([b_h, b_o]).reshape(1, Hp + Op)

    return dict(w_x=w_x.astype(compute_dtype), w_h=w_h.astype(compute_dtype), b=b,
                input_size=I, hidden_size=H, output_size=O, hp=Hp, op=Op,
                compute_dtype=compute_dtype)


def rnn_sequence_forward(xs, h0, params):
    """Run the RNN cell over a whole sequence in one pallas_call.

    xs : (T, B, I) inputs, h0 : (B, H) initial hidden.
    Returns (log_probs (T, B, O), hiddens (T, B, H)).
    """
    T, B, I = xs.shape
    H = params["hidden_size"]
    O = params["output_size"]
    Hp = params["hp"]
    Op = params["op"]
    compute_dtype = params["compute_dtype"]

    # Pad the initial hidden state once to the lane-aligned width.
    h0p = jnp.pad(h0.astype(jnp.float32), ((0, 0), (0, Hp - H)))

    kernel = functools.partial(_rnn_seq_kernel, hp=Hp, compute_dtype=compute_dtype)

    w_bytes = ((params["w_x"].size + params["w_h"].size)
               * params["w_x"].dtype.itemsize)
    cost = pl.CostEstimate(
        flops=2 * T * B * (I + Hp) * (Hp + Op),
        transcendentals=T * B * (O + 1),                    # exp per logit + log per row
        bytes_accessed=(xs.size * xs.dtype.itemsize
                        + h0p.size * 4
                        + w_bytes
                        + (Hp + Op) * 4
                        + T * B * (Hp + Op) * 4),
    )

    slab = pl.pallas_call(
        kernel,
        out_shape=jax.ShapeDtypeStruct((T, B, Hp + Op), jnp.float32),
        grid_spec=pltpu.PrefetchScalarGridSpec(
            num_scalar_prefetch=0,
            grid=(T,),
            in_specs=[
                pl.BlockSpec((None, B, I), lambda t: (t, 0, 0)),        # per-step x
                pl.BlockSpec((B, Hp), lambda t: (0, 0)),                # h0 (loaded once)
                pl.BlockSpec((I, Hp + Op), lambda t: (0, 0)),           # resident weights (x-part)
                pl.BlockSpec((Hp, Hp + Op), lambda t: (0, 0)),          # resident weights (h-part)
                pl.BlockSpec((1, Hp + Op), lambda t: (0, 0)),           # resident bias
            ],
            out_specs=pl.BlockSpec((None, B, Hp + Op), lambda t: (t, 0, 0)),
            scratch_shapes=[pltpu.VMEM((B, Hp), jnp.float32)],          # carried hidden
        ),
        compiler_params=pltpu.CompilerParams(
            dimension_semantics=("arbitrary",),   # timesteps are sequentially dependent
        ),
        cost_estimate=cost,
    )(xs, h0p, params["w_x"], params["w_h"], params["b"])

    hiddens = slab[:, :, :H]
    log_probs = slab[:, :, Hp:Hp + O]
    return log_probs, hiddens


def rnn_forward(x, h, params):
    """Exactly the PyTorch RNN.forward: a single cell step (T=1)."""
    log_probs, hiddens = rnn_sequence_forward(x[None], h, params)
    return log_probs[0], hiddens[0]


# ----------------------------- pure-JAX reference -----------------------------

def _ref_cell(x, h, w_i2h, b_i2h, w_i2o, b_i2o):
    combined = jnp.concatenate([x, h], axis=1)
    hidden = combined @ w_i2h.T + b_i2h
    out = jax.nn.log_softmax(combined @ w_i2o.T + b_i2o, axis=1)
    return out, hidden


def _ref_sequence(xs, h0, w_i2h, b_i2h, w_i2o, b_i2o):
    def step(h, x):
        out, h_new = _ref_cell(x, h, w_i2h, b_i2h, w_i2o, b_i2o)
        return h_new, (out, h_new)
    _, (outs, hids) = jax.lax.scan(step, h0, xs)
    return outs, hids


if __name__ == "__main__":
    # Small shapes consistent with the module's forward.
    B, I, H, O, T = 2, 16, 32, 24, 8

    key = jax.random.PRNGKey(0)
    kx, k1, k2, k3, k4 = jax.random.split(key, 5)

    # Deterministic parameter init (mimic nn.Linear uniform +-1/sqrt(fan_in)).
    fan = I + H
    bound = 1.0 / (fan ** 0.5)
    w_i2h = jax.random.uniform(k1, (H, fan), jnp.float32, -bound, bound)
    b_i2h = jax.random.uniform(k2, (H,), jnp.float32, -bound, bound)
    w_i2o = jax.random.uniform(k3, (O, fan), jnp.float32, -bound, bound)
    b_i2o = jax.random.uniform(k4, (O,), jnp.float32, -bound, bound)

    xs = jax.random.normal(kx, (T, B, I), jnp.float32)
    h0 = jnp.zeros((B, H), jnp.float32)          # RNN.initHidden, broadcast to batch

    # ---------------- f32 path ----------------
    params = prepare_rnn_params(w_i2h, b_i2h, w_i2o, b_i2o, I)

    # Single step: matches RNN.forward exactly.
    out1, hid1 = rnn_forward(xs[0], h0, params)
    out1, hid1 = jax.block_until_ready((out1, hid1))
    out1_ref, hid1_ref = _ref_cell(xs[0], h0, w_i2h, b_i2h, w_i2o, b_i2o)
    assert jnp.allclose(out1, out1_ref, atol=1e-4, rtol=1e-4)
    assert jnp.allclose(hid1, hid1_ref, atol=1e-4, rtol=1e-4)

    # Full sequence fused into one pallas_call.
    outs, hids = rnn_sequence_forward(xs, h0, params)
    outs, hids = jax.block_until_ready((outs, hids))
    outs_ref, hids_ref = _ref_sequence(xs, h0, w_i2h, b_i2h, w_i2o, b_i2o)
    assert jnp.allclose(outs, outs_ref, atol=1e-4, rtol=1e-4)
    assert jnp.allclose(hids, hids_ref, atol=1e-4, rtol=1e-4)

    # ---------------- bf16 MXU-operand path (f32 accumulate / elementwise) ----------------
    params_bf16 = prepare_rnn_params(w_i2h, b_i2h, w_i2o, b_i2o, I,
                                     compute_dtype=jnp.bfloat16)
    outs_b, hids_b = rnn_sequence_forward(xs, h0, params_bf16)
    outs_b, hids_b = jax.block_until_ready((outs_b, hids_b))
    assert jnp.allclose(outs_b, outs_ref, atol=1e-1, rtol=1e-1)
    assert jnp.allclose(hids_b, hids_ref, atol=1e-1, rtol=1e-1)

    # TODO(synk): nn.Tanh (h2h) and nn.Dropout (o2o) are constructed but never used in
    # the module's forward, so they are intentionally not implemented here.

    print("KERNEL_OK")
</pallas_src>

<mosaic_0001>
module attributes {stable_mosaic.version = 11 : i64} {
  func.func @_rnn_seq_kernel(%arg0: i32, %arg1: memref<1x2x16xf32, #tpu.memory_space<vmem>>, %arg2: memref<2x128xf32, #tpu.memory_space<vmem>>, %arg3: memref<16x256xf32, #tpu.memory_space<vmem>>, %arg4: memref<128x256xf32, #tpu.memory_space<vmem>>, %arg5: memref<1x256xf32, #tpu.memory_space<vmem>>, %arg6: memref<1x2x256xf32, #tpu.memory_space<vmem>>, %arg7: memref<2x128xf32, #tpu.memory_space<vmem>>) attributes {dimension_semantics = [#tpu.dimension_semantics<arbitrary>], iteration_bounds = array<i64: 1>, scalar_prefetch = 0 : i64, scratch_operands = 1 : i64, tpu.core_type = #tpu.core_type<tc>, window_params = [{transform_indices = @transform_0, window_bounds = array<i64: 1, 2, 16>}, {pipeline_mode = #tpu.pipeline_mode<synchronous>, transform_indices = @transform_1, window_bounds = array<i64: 2, 128>}, {pipeline_mode = #tpu.pipeline_mode<synchronous>, transform_indices = @transform_2, window_bounds = array<i64: 16, 256>}, {pipeline_mode = #tpu.pipeline_mode<synchronous>, transform_indices = @transform_3, window_bounds = array<i64: 128, 256>}, {pipeline_mode = #tpu.pipeline_mode<synchronous>, transform_indices = @transform_4, window_bounds = array<i64: 1, 256>}, {transform_indices = @transform_5, window_bounds = array<i64: 1, 2, 256>}]} {
    %c0_i32 = arith.constant 0 : i32
    %0 = arith.cmpi eq, %arg0, %c0_i32 : i32
    %1 = arith.extui %0 : i1 to i32
    %c0_i32_0 = arith.constant 0 : i32
    %2 = arith.cmpi ne, %1, %c0_i32_0 : i32
    scf.if %2 {
      %c0_21 = arith.constant 0 : index
      %c0_22 = arith.constant 0 : index
      %33 = vector.load %arg2[%c0_21, %c0_22] : memref<2x128xf32, #tpu.memory_space<vmem>>, vector<2x128xf32>
      %c0_23 = arith.constant 0 : index
      %c0_24 = arith.constant 0 : index
      %34 = vector.load %arg7[%c0_23, %c0_24] : memref<2x128xf32, #tpu.memory_space<vmem>>, vector<2x128xf32>
      tpu.vector_store %arg7[%c0_23, %c0_24], %33 {strides = array<i32>} : memref<2x128xf32, #tpu.memory_space<vmem>>, vector<2x128xf32>,
    } else {
    }
    %c0 = arith.constant 0 : index
    %c0_1 = arith.constant 0 : index
    %c0_2 = arith.constant 0 : index
    %3 = vector.load %arg1[%c0, %c0_1, %c0_2] : memref<1x2x16xf32, #tpu.memory_space<vmem>>, vector<1x2x16xf32>
    %4 = vector.shape_cast %3 : vector<1x2x16xf32> to vector<2x16xf32>
    %c0_3 = arith.constant 0 : index
    %c0_4 = arith.constant 0 : index
    %5 = vector.load %arg7[%c0_3, %c0_4] : memref<2x128xf32, #tpu.memory_space<vmem>>, vector<2x128xf32>
    %c0_5 = arith.constant 0 : index
    %c0_6 = arith.constant 0 : index
    %6 = vector.load %arg3[%c0_5, %c0_6] : memref<16x256xf32, #tpu.memory_space<vmem>>, vector<16x256xf32>
    %cst = arith.constant dense<0.000000e+00> : vector<2x256xf32>
    %7 = tpu.matmul %4, %6, %cst {dimension_numbers = #tpu.dot_dimension_numbers<[1], [0], [0], [1], [0, 0, 1, 1], [], []>} : vector<2x16xf32>, vector<16x256xf32>, vector<2x256xf32> -> vector<2x256xf32>
    %c0_7 = arith.constant 0 : index
    %c0_8 = arith.constant 0 : index
    %8 = vector.load %arg4[%c0_7, %c0_8] : memref<128x256xf32, #tpu.memory_space<vmem>>, vector<128x256xf32>
    %cst_9 = arith.constant dense<0.000000e+00> : vector<2x256xf32>
    %9 = tpu.matmul %5, %8, %cst_9 {dimension_numbers = #tpu.dot_dimension_numbers<[1], [0], [0], [1], [0, 0, 1, 1], [], []>} : vector<2x128xf32>, vector<128x256xf32>, vector<2x256xf32> -> vector<2x256xf32>
    %10 = arith.addf %7, %9 : vector<2x256xf32>
    %c0_10 = arith.constant 0 : index
    %c0_11 = arith.constant 0 : index
    %11 = vector.load %arg5[%c0_10, %c0_11] : memref<1x256xf32, #tpu.memory_space<vmem>>, vector<1x256xf32>
    %12 = vector.broadcast %11 : vector<1x256xf32> to vector<2x256xf32>
    %13 = arith.addf %10, %12 : vector<2x256xf32>
    %14 = vector.extract_strided_slice %13 {offsets = [0, 0], sizes = [2, 128], strides = [1, 1]} : vector<2x256xf32> to vector<2x128xf32>
    %15 = vector.extract_strided_slice %13 {offsets = [0, 128], sizes = [2, 128], strides = [1, 1]} : vector<2x256xf32> to vector<2x128xf32>
    %c0_12 = arith.constant 0 : index
    %c0_13 = arith.constant 0 : index
    %16 = vector.load %arg7[%c0_12, %c0_13] : memref<2x128xf32, #tpu.memory_space<vmem>>, vector<2x128xf32>
    tpu.vector_store %arg7[%c0_12, %c0_13], %14 {strides = array<i32>} : memref<2x128xf32, #tpu.memory_space<vmem>>, vector<2x128xf32>,
    %cst_14 = arith.constant dense<0xFF800000> : vector<2xf32>
    %17 = vector.multi_reduction <maximumf>, %15, %cst_14 [1] : vector<2x128xf32> to vector<2xf32>
    %18 = vector.shape_cast %17 : vector<2xf32> to vector<2x1xf32>
    %19 = vector.broadcast %18 : vector<2x1xf32> to vector<2x128xf32>
    %20 = arith.subf %15, %19 : vector<2x128xf32>
    %21 = math.exp %20 : vector<2x128xf32>
    %cst_15 = arith.constant dense<0.000000e+00> : vector<2xf32>
    %22 = vector.multi_reduction <add>, %21, %cst_15 [1] : vector<2x128xf32> to vector<2xf32>
    %23 = vector.shape_cast %22 : vector<2xf32> to vector<2x1xf32>
    %24 = math.log %23 : vector<2x1xf32>
    %25 = vector.broadcast %24 : vector<2x1xf32> to vector<2x128xf32>
    %26 = arith.subf %20, %25 : vector<2x128xf32>
    %c0_16 = arith.constant 0 : index
    %c0_17 = arith.constant 0 : index
    %c0_18 = arith.constant 0 : index
    %27 = vector.load %arg6[%c0_16, %c0_17, %c0_18] : memref<1x2x256xf32, #tpu.memory_space<vmem>>, vector<1x2x128xf32>
    %28 = vector.shape_cast %27 : vector<1x2x128xf32> to vector<2x128xf32>
    %29 = vector.shape_cast %14 : vector<2x128xf32> to vector<1x2x128xf32>
    tpu.vector_store %arg6[%c0_16, %c0_17, %c0_18], %29 {strides = array<i32>} : memref<1x2x256xf32, #tpu.memory_space<vmem>>, vector<1x2x128xf32>,
    %c0_19 = arith.constant 0 : index
    %c0_20 = arith.constant 0 : index
    %c128 = arith.constant 128 : index
    %30 = vector.load %arg6[%c0_19, %c0_20, %c128] : memref<1x2x256xf32, #tpu.memory_space<vmem>>, vector<1x2x128xf32>
    %31 = vector.shape_cast %30 : vector<1x2x128xf32> to vector<2x128xf32>
    %32 = vector.shape_cast %26 : vector<2x128xf32> to vector<1x2x128xf32>
    tpu.vector_store %arg6[%c0_19, %c0_20, %c128], %32 {strides = array<i32>} : memref<1x2x256xf32, #tpu.memory_space<vmem>>, vector<1x2x128xf32>,
    return
  }
  func.func @transform_0(%arg0: i32) -> (i32, i32, i32) {
    %c0_i32 = arith.constant 0 : i32
    %c0_i32_0 = arith.constant 0 : i32
    %c0_i32_1 = arith.constant 0 : i32
    return %arg0, %c0_i32, %c0_i32_0 : i32, i32, i32
  }
  func.func @transform_1(%arg0: i32) -> (i32, i32) {
    %c0_i32 = arith.constant 0 : i32
    %c0_i32_0 = arith.constant 0 : i32
    %c0_i32_1 = arith.constant 0 : i32
    return %c0_i32, %c0_i32_0 : i32, i32
  }
  func.func @transform_2(%arg0: i32) -> (i32, i32) {
    %c0_i32 = arith.constant 0 : i32
    %c0_i32_0 = arith.constant 0 : i32
    %c0_i32_1 = arith.constant 0 : i32
    return %c0_i32, %c0_i32_0 : i32, i32
  }
  func.func @transform_3(%arg0: i32) -> (i32, i32) {
    %c0_i32 = arith.constant 0 : i32
    %c0_i32_0 = arith.constant 0 : i32
    %c0_i32_1 = arith.constant 0 : i32
    return %c0_i32, %c0_i32_0 : i32, i32
  }
  func.func @transform_4(%arg0: i32) -> (i32, i32) {
    %c0_i32 = arith.constant 0 : i32
    %c0_i32_0 = arith.constant 0 : i32
    %c0_i32_1 = arith.constant 0 : i32
    return %c0_i32, %c0_i32_0 : i32, i32
  }
  func.func @transform_5(%arg0: i32) -> (i32, i32, i32) {
    %c0_i32 = arith.constant 0 : i32
    %c0_i32_0 = arith.constant 0 : i32
    %c0_i32_1 = arith.constant 0 : i32
    return %arg0, %c0_i32, %c0_i32_0 : i32, i32, i32
  }
}

</mosaic_0001>

<llo_original>
// kernel: tpu_custom_call.1
$region0: #{tpu_custom_call.1}
  #allocation0 [shape = 'u32[]', space=smem, size = 0x4, offset = 0x4, fixed_abs, tag = 'smem constant byte address 0x4 - core index']
  #allocation1 [shape = 'u32[144,128]{1,0:T(1,128)}', space=vmem, size = 0x12000, scoped, tag = 'internal scratch']
  #allocation2 [shape = 'f32[2,128]{1,0:T(2,128)}', space=vmem, size = 0x400, scoped, tag = 'scratch operand']
  %s0 = inlined_call_operand.hbm [shape: f32[1,2,16], index: 0, kind: input, shape index: {}]
  %s1 = inlined_call_operand.vmem [shape: f32[2,128], index: 1, kind: input, shape index: {}]
  %s2 = inlined_call_operand.hbm [shape: f32[16,256], index: 2, kind: input, shape index: {}]
  %s3 = inlined_call_operand.hbm [shape: f32[128,256], index: 3, kind: input, shape index: {}]
  %s4 = inlined_call_operand.vmem [shape: f32[1,256], index: 4, kind: input, shape index: {}]
  %s5 = inlined_call_operand.hbm [shape: f32[1,2,256], index: 5, kind: output, shape index: {}]
  %s6 = sld [smem:[#allocation0]]
  $region46: #{tpu_custom_call.1} parent=0
    _
  %s8 = ssub.s32 1, %s6
  %s9 = scalar_select 0, %s8, %s6
  $region1: #{tpu_custom_call.1} parent=0
    #allocation3 [shape = 'u8[1024]{0}', space=vmem, size = 0x400, scoped, tag = 'input window, operand 0, single buffered']
    #allocation4 [shape = 's32[1]{0}', space=sflag, size = 0x4, scoped, tag = 'scoped memory for tpu_custom_call.1']
    #allocation5 [shape = 's32[1]{0}', space=sflag, size = 0x4, scoped, tag = 'scoped memory for tpu_custom_call.1']
    #allocation6 [shape = 'u8[16384]{0}', space=vmem, size = 0x4000, scoped, tag = 'input window, operand 2, single buffered']
    #allocation7 [shape = 's32[1]{0}', space=sflag, size = 0x4, scoped, tag = 'scoped memory for tpu_custom_call.1']
    #allocation8 [shape = 'u8[131072]{0}', space=vmem, size = 0x20000, scoped, tag = 'input window, operand 3, single buffered']
    #allocation9 [shape = 'u8[2048]{0}', space=vmem, size = 0x800, scoped, tag = 'output window, operand 0, single buffered']
    %10 = vsyncpa [#allocation4], 0
    %11 = vsyncpa [#allocation7], 0
    %12 = vsyncpa [#allocation5], 0
    // Predicated region
    $region2: #{tpu_custom_call.1} parent=1 // pred_check
      _
    $region3: #{tpu_custom_call.1} parent=1 // pred_check_branch
      %14 = sbr.rel (0) target = $region5
    $region4: #{tpu_custom_call.1} parent=1 // pred_region
      %s16 = ssub.s32 32, 32
      %17 = vsyncadd [#allocation4], %s16
      %s19 = sshll.u32 [#allocation3], 4
      %s20 = int_to_ptr.vmem [resolvable:$true] %s19
      %22 = dma.hbm_to_vmem [thread:$0]  %s0, 32, %s20, [#allocation4]
    $region5: #{tpu_custom_call.1} parent=1 // pred_fallthru
      _
    // Predicated region
    $region6: #{tpu_custom_call.1} parent=1 // pred_check
      _
    $region7: #{tpu_custom_call.1} parent=1 // pred_check_branch
      %24 = sbr.rel (0) target = $region9
    $region8: #{tpu_custom_call.1} parent=1 // pred_region
      _
    $region9: #{tpu_custom_call.1} parent=1 // pred_fallthru
      _
    // Predicated region
    $region10: #{tpu_custom_call.1} parent=1 // pred_check
      _
    $region11: #{tpu_custom_call.1} parent=1 // pred_check_branch
      %26 = sbr.rel (0) target = $region13
    $region12: #{tpu_custom_call.1} parent=1 // pred_region
      %s28 = ssub.s32 512, 512
      %29 = vsyncadd [#allocation7], %s28
      %s30 = sshll.u32 [#allocation6], 4
      %s31 = int_to_ptr.vmem [resolvable:$true] %s30
      %36 = dma.hbm_to_vmem [thread:$0]  %s2, 512, %s31, [#allocation7], 256, 256, 16
    $region13: #{tpu_custom_call.1} parent=1 // pred_fallthru
      _
    // Predicated region
    $region14: #{tpu_custom_call.1} parent=1 // pred_check
      _
    $region15: #{tpu_custom_call.1} parent=1 // pred_check_branch
      %38 = sbr.rel (0) target = $region17
    $region16: #{tpu_custom_call.1} parent=1 // pred_region
      %s40 = ssub.s32 4096, 4096
      %41 = vsyncadd [#allocation7], %s40
      %s42 = sshll.u32 [#allocation8], 4
      %s43 = int_to_ptr.vmem [resolvable:$true] %s42
      %48 = dma.hbm_to_vmem [thread:$0]  %s3, 4096, %s43, [#allocation7], 256, 256, 16
    $region17: #{tpu_custom_call.1} parent=1 // pred_fallthru
      _
    // Predicated region
    $region18: #{tpu_custom_call.1} parent=1 // pred_check
      _
    $region19: #{tpu_custom_call.1} parent=1 // pred_check_branch
      %50 = sbr.rel (0) target = $region21
    $region20: #{tpu_custom_call.1} parent=1 // pred_region
      _
    $region21: #{tpu_custom_call.1} parent=1 // pred_fallthru
      _
    // Predicated region
    $region22: #{tpu_custom_call.1} parent=1 // pred_check
      _
    $region23: #{tpu_custom_call.1} parent=1 // pred_check_branch
      %52 = sbr.rel (0) target = $region25
    $region24: #{tpu_custom_call.1} parent=1 // pred_region
      %53 = dma.done [#allocation4], 32
    $region25: #{tpu_custom_call.1} parent=1 // pred_fallthru
      _
    // Predicated region
    $region26: #{tpu_custom_call.1} parent=1 // pred_check
      _
    $region27: #{tpu_custom_call.1} parent=1 // pred_check_branch
      %55 = sbr.rel (0) target = $region29
    $region28: #{tpu_custom_call.1} parent=1 // pred_region
      %56 = dma.done [#allocation7], 512
    $region29: #{tpu_custom_call.1} parent=1 // pred_fallthru
      _
    // Predicated region
    $region30: #{tpu_custom_call.1} parent=1 // pred_check
      _
    $region31: #{tpu_custom_call.1} parent=1 // pred_check_branch
      %58 = sbr.rel (0) target = $region33
    $region32: #{tpu_custom_call.1} parent=1 // pred_region
      %59 = dma.done [#allocation7], 4096
    $region33: #{tpu_custom_call.1} parent=1 // pred_fallthru
      _
    %p60 = scmp.eq.s32.totalorder 0, 0
    // Predicated region
    $region34: #{tpu_custom_call.1} parent=1 // pred_check
      %p61 = pneg %p60
    $region35: #{tpu_custom_call.1} parent=1 // pred_check_branch
      %63 = sbr.rel (%p61) target = $region37
    $region36: #{tpu_custom_call.1} parent=1 // pred_region
      %v64 = vld [vmem:[%s1] sm:$0x3]
      %65 = vst [vmem:[#allocation2] sm:$0x3] %v64
    $region37: #{tpu_custom_call.1} parent=1 // pred_fallthru
      _
    %v66 = vld [vmem:[#allocation3] sm:$0x3]
    %v67 = vld [vmem:[#allocation2] sm:$0x3]
    %v68 = vld [vmem:[#allocation6] sm:$0xff]
    %v69 = vld [vmem:[#allocation6 + $0x8] sm:$0xff]
    %v70 = vld [vmem:[#allocation6 + $0x10] sm:$0xff]
    %v71 = vld [vmem:[#allocation6 + $0x18] sm:$0xff]
    %v72 = vld [vmem:[#allocation8] sm:$0xff]
    %v73 = vld [vmem:[#allocation8 + $0x8] sm:$0xff]
    %v74 = vld [vmem:[#allocation8 + $0x10] sm:$0xff]
    %v75 = vld [vmem:[#allocation8 + $0x18] sm:$0xff]
    %v76 = vld [vmem:[#allocation8 + $0x20] sm:$0xff]
    %v77 = vld [vmem:[#allocation8 + $0x28] sm:$0xff]
    %v78 = vld [vmem:[#allocation8 + $0x30] sm:$0xff]
    %v79 = vld [vmem:[#allocation8 + $0x38] sm:$0xff]
    %v80 = vld [vmem:[#allocation8 + $0x40] sm:$0xff]
    %v81 = vld [vmem:[#allocation8 + $0x48] sm:$0xff]
    %v82 = vld [vmem:[#allocation8 + $0x50] sm:$0xff]
    %v83 = vld [vmem:[#allocation8 + $0x58] sm:$0xff]
    %v84 = vld [vmem:[#allocation8 + $0x60] sm:$0xff]
    %v85 = vld [vmem:[#allocation8 + $0x68] sm:$0xff]
    %v86 = vld [vmem:[#allocation8 + $0x70] sm:$0xff]
    %v87 = vld [vmem:[#allocation8 + $0x78] sm:$0xff]
    %v88 = vld [vmem:[#allocation8 + $0x80] sm:$0xff]
    %v89 = vld [vmem:[#allocation8 + $0x88] sm:$0xff]
    %v90 = vld [vmem:[#allocation8 + $0x90] sm:$0xff]
    %v91 = vld [vmem:[#allocation8 + $0x98] sm:$0xff]
    %v92 = vld [vmem:[#allocation8 + $0xa0] sm:$0xff]
    %v93 = vld [vmem:[#allocation8 + $0xa8] sm:$0xff]
    %v94 = vld [vmem:[#allocation8 + $0xb0] sm:$0xff]
    %v95 = vld [vmem:[#allocation8 + $0xb8] sm:$0xff]
    %v96 = vld [vmem:[#allocation8 + $0xc0] sm:$0xff]
    %v97 = vld [vmem:[#allocation8 + $0xc8] sm:$0xff]
    %v98 = vld [vmem:[#allocation8 + $0xd0] sm:$0xff]
    %v99 = vld [vmem:[#allocation8 + $0xd8] sm:$0xff]
    %v100 = vld [vmem:[#allocation8 + $0xe0] sm:$0xff]
    %v101 = vld [vmem:[#allocation8 + $0xe8] sm:$0xff]
    %v102 = vld [vmem:[#allocation8 + $0xf0] sm:$0xff]
    %v103 = vld [vmem:[#allocation8 + $0xf8] sm:$0xff]
    %104 = vmatprep.subr.mxu0 %v73
    %105 = vmatpush1.msra.mxu0 %v72
    %106 = vmatprep.subr.mxu0 %v75
    %107 = vmatpush1.msra.mxu0 %v74
    %108 = vmatprep.subr.mxu0 %v77
    %109 = vmatpush1.msra.mxu0 %v76
    %110 = vmatprep.subr.mxu0 %v79
    %111 = vmatpush1.msra.mxu0 %v78
    %112 = vmatprep.subr.mxu0 %v81
    %113 = vmatpush1.msra.mxu0 %v80
    %114 = vmatprep.subr.mxu0 %v83
    %115 = vmatpush1.msra.mxu0 %v82
    %116 = vmatprep.subr.mxu0 %v85
    %117 = vmatpush1.msra.mxu0 %v84
    %118 = vmatprep.subr.mxu0 %v87
    %119 = vmatpush1.msra.mxu0 %v86
    %120 = vmatprep.subr.mxu0 %v89
    %121 = vmatpush1.msra.mxu0 %v88
    %122 = vmatprep.subr.mxu0 %v91
    %123 = vmatpush1.msra.mxu0 %v90
    %124 = vmatprep.subr.mxu0 %v93
    %125 = vmatpush1.msra.mxu0 %v92
    %126 = vmatprep.subr.mxu0 %v95
    %127 = vmatpush1.msra.mxu0 %v94
    %128 = vmatprep.subr.mxu0 %v97
    %129 = vmatpush1.msra.mxu0 %v96
    %130 = vmatprep.subr.mxu0 %v99
    %131 = vmatpush1.msra.mxu0 %v98
    %132 = vmatprep.subr.mxu0 %v101
    %133 = vmatpush1.msra.mxu0 %v100
    %134 = vmatprep.subr.mxu0 %v103
    %135 = vmatpush1.msra.mxu0 %v102
    %136 = vmatprep.subr.mxu0 0.0
    %137 = vmatpush1.msra.mxu0 0.0
    %138 = vmatprep.subr.mxu0 0.0
    %139 = vmatpush1.msra.mxu0 0.0
    %140 = vmatprep.subr.mxu0 0.0
    %141 = vmatpush1.msra.mxu0 0.0
    %142 = vmatprep.subr.mxu0 0.0
    %143 = vmatpush1.msra.mxu0 0.0
    %144 = vmatprep.subr.mxu0 0.0
    %145 = vmatpush1.msra.mxu0 0.0
    %146 = vmatprep.subr.mxu0 0.0
    %147 = vmatpush1.msra.mxu0 0.0
    %148 = vmatprep.subr.mxu0 0.0
    %149 = vmatpush1.msra.mxu0 0.0
    %150 = vmatprep.subr.mxu0 0.0
    %151 = vmatpush1.msra.mxu0 0.0
    %152 = vmatprep.subr.mxu0 0.0
    %153 = vmatpush1.msra.mxu0 0.0
    %154 = vmatprep.subr.mxu0 0.0
    %155 = vmatpush1.msra.mxu0 0.0
    %156 = vmatprep.subr.mxu0 0.0
    %157 = vmatpush1.msra.mxu0 0.0
    %158 = vmatprep.subr.mxu0 0.0
    %159 = vmatpush1.msra.mxu0 0.0
    %160 = vmatprep.subr.mxu0 0.0
    %161 = vmatpush1.msra.mxu0 0.0
    %162 = vmatprep.subr.mxu0 0.0
    %163 = vmatpush1.msra.mxu0 0.0
    %164 = vmatprep.subr.mxu0 0.0
    %165 = vmatpush1.msra.mxu0 0.0
    %166 = vmatprep.subr.mxu0 0.0
    %167 = vmatpush1.msra.mxu0 0.0
    %168 = vmatprep.mubr.f32.mxu0 0.0
    %169 = vmatmul.mubr.f32.gmra.mrb[0].mxu0 %v67
    %v170 = vpop.f32.mrb[0].mxu0
    %v171 = vadd.f32 0.0, %v170
    %v172 = vpop.f32.mrb[0].mxu0
    %v173 = vadd.f32 0.0, %v172
    %174 = vdwg.mxu0
    %vm175 = vcmask 130048
    %v177 = vsel %vm175, %v66, 0
    %179 = vmatprep.subr.mxu0 %v69
    %180 = vmatpush1.msra.mxu0 %v68
    %181 = vmatprep.subr.mxu0 %v71
    %182 = vmatpush1.msra.mxu0 %v70
    %183 = vmatprep.subr.mxu0 0.0
    %184 = vmatpush1.msra.mxu0 0.0
    %185 = vmatprep.subr.mxu0 0.0
    %186 = vmatpush1.msra.mxu0 0.0
    %187 = vmatprep.subr.mxu0 0.0
    %188 = vmatpush1.msra.mxu0 0.0
    %189 = vmatprep.subr.mxu0 0.0
    %190 = vmatpush1.msra.mxu0 0.0
    %191 = vmatprep.subr.mxu0 0.0
    %192 = vmatpush1.msra.mxu0 0.0
    %193 = vmatprep.subr.mxu0 0.0
    %194 = vmatpush1.msra.mxu0 0.0
    %195 = vmatprep.subr.mxu0 0.0
    %196 = vmatpush1.msra.mxu0 0.0
    %197 = vmatprep.subr.mxu0 0.0
    %198 = vmatpush1.msra.mxu0 0.0
    %199 = vmatprep.subr.mxu0 0.0
    %200 = vmatpush1.msra.mxu0 0.0
    %201 = vmatprep.subr.mxu0 0.0
    %202 = vmatpush1.msra.mxu0 0.0
    %203 = vmatprep.subr.mxu0 0.0
    %204 = vmatpush1.msra.mxu0 0.0
    %205 = vmatprep.subr.mxu0 0.0
    %206 = vmatpush1.msra.mxu0 0.0
    %207 = vmatprep.subr.mxu0 0.0
    %208 = vmatpush1.msra.mxu0 0.0
    %209 = vmatprep.subr.mxu0 0.0
    %210 = vmatpush1.msra.mxu0 0.0
    %211 = vmatprep.subr.mxu0 0.0
    %212 = vmatpush1.msra.mxu0 0.0
    %213 = vmatprep.subr.mxu0 0.0
    %214 = vmatpush1.msra.mxu0 0.0
    %215 = vmatprep.subr.mxu0 0.0
    %216 = vmatpush1.msra.mxu0 0.0
    %217 = vmatprep.subr.mxu0 0.0
    %218 = vmatpush1.msra.mxu0 0.0
    %219 = vmatprep.subr.mxu0 0.0
    %220 = vmatpush1.msra.mxu0 0.0
    %221 = vmatprep.subr.mxu0 0.0
    %222 = vmatpush1.msra.mxu0 0.0
    %223 = vmatprep.subr.mxu0 0.0
    %224 = vmatpush1.msra.mxu0 0.0
    %225 = vmatprep.subr.mxu0 0.0
    %226 = vmatpush1.msra.mxu0 0.0
    %227 = vmatprep.subr.mxu0 0.0
    %228 = vmatpush1.msra.mxu0 0.0
    %229 = vmatprep.subr.mxu0 0.0
    %230 = vmatpush1.msra.mxu0 0.0
    %231 = vmatprep.subr.mxu0 0.0
    %232 = vmatpush1.msra.mxu0 0.0
    %233 = vmatprep.subr.mxu0 0.0
    %234 = vmatpush1.msra.mxu0 0.0
    %235 = vmatprep.subr.mxu0 0.0
    %236 = vmatpush1.msra.mxu0 0.0
    %237 = vmatprep.subr.mxu0 0.0
    %238 = vmatpush1.msra.mxu0 0.0
    %239 = vmatprep.subr.mxu0 0.0
    %240 = vmatpush1.msra.mxu0 0.0
    %241 = vmatprep.subr.mxu0 0.0
    %242 = vmatpush1.msra.mxu0 0.0
    %243 = vmatprep.mubr.f32.mxu0 0.0
    %244 = vmatmul.mubr.f32.gmra.mrb[0].mxu0 %v177
    %v245 = vpop.f32.mrb[0].mxu0
    %v246 = vadd.f32 %v171, %v245
    %v247 = vpop.f32.mrb[0].mxu0
    %v248 = vadd.f32 %v173, %v247
    %249 = vdwg.mxu0
    %v250 = vld [vmem:[%s4] sm:$0x3]
    %v252 = vlaneseq
    %v253 = vshrl.u32 %v252, 7
    %v254 = vsub.s32 0, %v253
    %v255 = vrot.slane %v250, %v254
    %v256 = vlaneseq
    %v257 = vshrl.u32 %v256, 7
    %v258 = vsub.s32 1, %v257
    %v259 = vrot.slane %v250, %v258
    %v262 = vadd.f32 %v246, %v255
    %v263 = vadd.f32 %v248, %v259
    %264 = vst [vmem:[#allocation2] sm:$0x3] %v262
    %vm265 = vcmask 1041408
    %v266 = vsel %vm265, %v263, -inf
    %267 = vmax.xlane.f32.xlu0 %v266
    %v268 = vpop.xlane.xlu0 %267
    %v269 = vsub.f32 %v263, %v268
    %v270 = vmul.f32 %v269, 1.442695
    %v271 = vpow.pop %v270
    %v272 = vsel %vm265, %v271, 0.0
    %273 = vadd.xlane.f32.xlu0 %v272
    %v274 = vpop.xlane.xlu0 %273
    %v275 = vlog2.pop %v274
    %v276 = vmul.f32 %v275, 0.6931472
    %v277 = vsub.f32 %v269, %v276
    %278 = vst [vmem:[#allocation9] sm:$0x3] %v262
    %279 = vst [vmem:[#allocation9 + $0x2] sm:$0x3] %v277
    // Predicated region
    $region38: #{tpu_custom_call.1} parent=1 // pred_check
      _
    $region39: #{tpu_custom_call.1} parent=1 // pred_check_branch
      %281 = sbr.rel (0) target = $region41
    $region40: #{tpu_custom_call.1} parent=1 // pred_region
      %s283 = ssub.s32 64, 64
      %284 = vsyncadd [#allocation5], %s283
      %s286 = sshll.u32 [#allocation9], 4
      %s287 = int_to_ptr.vmem [resolvable:$true] %s286
      %289 = dma.vmem_to_hbm [thread:$0]  %s287, 64, %s5, [#allocation5]
    $region41: #{tpu_custom_call.1} parent=1 // pred_fallthru
      _
    // Predicated region
    $region42: #{tpu_custom_call.1} parent=1 // pred_check
      _
    $region43: #{tpu_custom_call.1} parent=1 // pred_check_branch
      %291 = sbr.rel (0) target = $region45
    $region44: #{tpu_custom_call.1} parent=1 // pred_region
      %292 = dma.done [#allocation5], 64
    $region45: #{tpu_custom_call.1} parent=1 // pred_fallthru
      _
    %293 = vsyncpa [#allocation4], 1
    %294 = vsyncpa [#allocation7], 1
    %295 = vsyncpa [#allocation5], 1

</llo_original>
